<compile_context>
chip_gen: v6e
topology: v6e:2x2x1
jax: 0.10.0
libtpu: 0.0.40
codegen_flags: <defaults>
</compile_context>

<pallas_src>
import jax
import jax.numpy as jnp
from jax.experimental import pallas as pl
from jax.experimental.pallas import tpu as pltpu

HIDDEN = 32


def _mish_fast(v):
    # mish(x) = x * tanh(softplus(x)) = x * n / (n + 2),  n = e^x (e^x + 2)  (exact identity).
    # One EUP exp + one EUP approx reciprocal; the Newton step runs on the VPU (which has slack).
    e = jnp.exp(jnp.minimum(v, 20.0))       # clamp keeps e^x finite; mish(x) == x for x >= 20 in f32
    n = e * (e + 2.0)
    d = n + 2.0
    r = pl.reciprocal(d, approx=True)
    r = r * (2.0 - d * r)                   # one Newton refinement -> ~full f32 accuracy
    return v * n * r


def _mish_ref(v):
    # torch.nn.Mish reference form
    return v * jnp.tanh(jax.nn.softplus(v))


def actor_critic_kernel(x_ref, w1_ref, w2_ref, wmid_ref, wout_ref, b_ref, out_ref):
    """Feature-major fused forward: x_ref (IN, TB) -> out_ref (3, TB) = [mean; std; value]."""
    H = w1_ref.shape[0]
    f32 = jnp.float32
    x = x_ref[...]                                                       # (IN, TB)

    # ---- head: Linear -> Tanh -> Linear -> Mish  (feature-major: y = W @ x + b) ----
    h = jnp.tanh(jnp.dot(w1_ref[...], x, preferred_element_type=f32) + b_ref[0:H, :])
    head = _mish_fast(jnp.dot(w2_ref[...], h, preferred_element_type=f32) + b_ref[H:2 * H, :])

    # ---- shared nonlinear features: rows 0:H = head^2 (critic Sqr), rows H:2H = exp(-head^2) (actor Exp)
    sq = head * head
    feat = jnp.concatenate([sq, jnp.exp(-sq)], axis=0)                   # (2H, TB)

    # ---- single block-diagonal middle matmul: rows 0:H -> critic.li, rows H:3H -> actor_{mean,log_std}.li
    mid = jnp.dot(wmid_ref[...], feat, preferred_element_type=f32) + b_ref[2 * H:5 * H, :]
    c = _mish_fast(mid[0:H, :])                                          # critic hidden   (H, TB)
    ms = jnp.exp(-jnp.square(mid[H:3 * H, :]))                           # [mean|log_std]  (2H, TB)

    # ---- fused output heads: one (3, 3H) @ (3H, TB) matmul ----
    cm = jnp.concatenate([c, ms], axis=0)                                # (3H, TB)
    pre = jnp.dot(wout_ref[...], cm, preferred_element_type=f32) + b_ref[5 * H:5 * H + 3, :]

    # rows of `pre`: 0 = mean_pre, 1 = log_std_pre, 2 = value.
    # tanh / exp are intentionally evaluated on all 3 rows and masked (only 3 rows -> negligible).
    scale = b_ref[5 * H + 3:5 * H + 4, :]                                # (1,1) actor_log_std_scale
    row = jax.lax.broadcasted_iota(jnp.int32, pre.shape, 0)
    mean_a = jnp.tanh(pre)
    std_a = jnp.exp(scale * jnp.exp(-jnp.square(pre)))
    out_ref[...] = jnp.where(row == 0, mean_a, jnp.where(row == 1, std_a, pre))


def init_params(key, num_inputs, hidden_size, std=0.001):
    """Deterministic init mimicking torch.nn.Linear (uniform +-1/sqrt(fan_in)).

    Weights are stored torch-style [out, in]; biases as [out]."""
    def linear_init(key, fan_in, fan_out):
        kw, kb = jax.random.split(key)
        bound = 1.0 / jnp.sqrt(jnp.float32(fan_in))
        w = jax.random.uniform(kw, (fan_out, fan_in), jnp.float32, -bound, bound)
        b = jax.random.uniform(kb, (fan_out,), jnp.float32, -bound, bound)
        return w, b

    keys = jax.random.split(key, 8)
    p = {}
    p["w1"], p["b1"] = linear_init(keys[0], num_inputs, hidden_size)     # head.li
    p["w2"], p["b2"] = linear_init(keys[1], hidden_size, hidden_size)    # head.lo
    p["wc1"], p["bc1"] = linear_init(keys[2], hidden_size, hidden_size)  # critic.li
    p["wc2"], p["bc2"] = linear_init(keys[3], hidden_size, 1)            # critic.lo
    p["wm1"], p["bm1"] = linear_init(keys[4], hidden_size, hidden_size)  # actor_mean.li
    p["wm2"], p["bm2"] = linear_init(keys[5], hidden_size, 1)            # actor_mean.lo
    p["ws1"], p["bs1"] = linear_init(keys[6], hidden_size, hidden_size)  # actor_log_std.li
    p["ws2"], p["bs2"] = linear_init(keys[7], hidden_size, 1)            # actor_log_std.lo
    p["scale"] = jnp.full((1,), std, dtype=jnp.float32)                  # actor_log_std_scale
    return p


def pack_params(p):
    """One-time host-side packing into feature-major, lane/sublane-tile friendly slabs."""
    H = p["w2"].shape[0]
    f32 = jnp.float32
    zHH = jnp.zeros((H, H), f32)
    z1H = jnp.zeros((1, H), f32)

    # block-diagonal middle slab (3H, 2H): cols 0:H see head^2, cols H:2H see exp(-head^2)
    w_mid = jnp.concatenate([
        jnp.concatenate([p["wc1"], zHH], axis=1),   # rows 0:H   -> critic hidden
        jnp.concatenate([zHH, p["wm1"]], axis=1),   # rows H:2H  -> actor_mean hidden
        jnp.concatenate([zHH, p["ws1"]], axis=1),   # rows 2H:3H -> actor_log_std hidden
    ], axis=0)

    # fused output slab (3, 3H); cm rows = [c | ms_mean | ms_log_std]
    w_out = jnp.concatenate([
        jnp.concatenate([z1H, p["wm2"], z1H], axis=1),   # row 0: mean
        jnp.concatenate([z1H, z1H, p["ws2"]], axis=1),   # row 1: std (log_std branch)
        jnp.concatenate([p["wc2"], z1H, z1H], axis=1),   # row 2: value
    ], axis=0)

    # bias column slab (5H+8, 1):
    # [0:H]=b1 [H:2H]=b2 [2H:3H]=bc1 [3H:4H]=bm1 [4H:5H]=bs1
    # [5H:5H+3]=[bm2,bs2,bc2] [5H+3]=actor_log_std_scale, then zero pad to a multiple of 8 rows.
    b_all = jnp.concatenate(
        [p["b1"], p["b2"], p["bc1"], p["bm1"], p["bs1"],
         p["bm2"], p["bs2"], p["bc2"], p["scale"], jnp.zeros((4,), f32)])[:, None]

    return {"w1": p["w1"], "w2": p["w2"], "w_mid": w_mid, "w_out": w_out, "b_all": b_all}


def actor_critic_forward(x_fm, packed, tb=128):
    """x_fm is feature-major (num_inputs, B); returns (mean, std, value) each (B, 1)."""
    IN, B = x_fm.shape
    assert B % tb == 0, "batch must be a multiple of the block size"  # TODO(synk): ragged batch
    grid = (B // tb,)

    def full_spec(a):  # whole-array, VMEM-resident across all grid steps
        return pl.BlockSpec(a.shape, lambda i: (0, 0))

    out_fm = pl.pallas_call(
        actor_critic_kernel,
        out_shape=jax.ShapeDtypeStruct((3, B), jnp.float32),
        grid=grid,
        in_specs=[
            pl.BlockSpec((IN, tb), lambda i: (0, i)),     # x: batch rides the lane axis
            full_spec(packed["w1"]),
            full_spec(packed["w2"]),
            full_spec(packed["w_mid"]),
            full_spec(packed["w_out"]),
            full_spec(packed["b_all"]),
        ],
        out_specs=pl.BlockSpec((3, tb), lambda i: (0, i)),
        compiler_params=pltpu.CompilerParams(dimension_semantics=("parallel",)),
    )(x_fm, packed["w1"], packed["w2"], packed["w_mid"], packed["w_out"], packed["b_all"])

    # In production keep rollout buffers feature-major; transpose here only for the demo API.
    mean = out_fm[0:1, :].T
    std = out_fm[1:2, :].T
    value = out_fm[2:3, :].T
    return mean, std, value


def actor_critic_ref(x_bm, p):
    """Plain-JAX reference (true module semantics, batch-major) for correctness checking."""
    def lin(h, w, b):
        return h @ w.T + b
    h = jnp.tanh(lin(x_bm, p["w1"], p["b1"]))
    head = _mish_ref(lin(h, p["w2"], p["b2"]))
    value = lin(_mish_ref(lin(head * head, p["wc1"], p["bc1"])), p["wc2"], p["bc2"])
    e = jnp.exp(-head * head)
    mean = jnp.tanh(lin(jnp.exp(-jnp.square(lin(e, p["wm1"], p["bm1"]))), p["wm2"], p["bm2"]))
    log_std = jnp.exp(-jnp.square(lin(jnp.exp(-jnp.square(lin(e, p["ws1"], p["bs1"]))),
                                      p["ws2"], p["bs2"])))
    std = jnp.exp(p["scale"] * log_std)
    return mean, std, value


if __name__ == "__main__":
    key = jax.random.PRNGKey(0)
    k_x, k_p = jax.random.split(key)

    num_inputs = 4     # cartpole observation dim
    batch = 512        # rollout batch (amortizes the launch over the grid)
    tile_b = 128       # lane-dense batch tile; grid = 4 steps

    x_bm = jax.random.normal(k_x, (batch, num_inputs), dtype=jnp.float32)
    params = init_params(k_p, num_inputs, HIDDEN, std=0.001)
    packed = pack_params(params)

    x_fm = x_bm.T      # feature-major layout for the kernel
    mean, std, value = actor_critic_forward(x_fm, packed, tb=tile_b)
    jax.block_until_ready((mean, std, value))

    mean_r, std_r, value_r = actor_critic_ref(x_bm, params)
    assert mean.shape == (batch, 1) and std.shape == (batch, 1) and value.shape == (batch, 1)
    assert jnp.allclose(mean, mean_r, atol=5e-5, rtol=5e-5)
    assert jnp.allclose(std, std_r, atol=5e-5, rtol=5e-5)
    assert jnp.allclose(value, value_r, atol=5e-5, rtol=5e-5)

    print("KERNEL_OK")
</pallas_src>

<mosaic_0001>
module attributes {stable_mosaic.version = 11 : i64} {
  func.func @actor_critic_kernel(%arg0: i32, %arg1: memref<4x128xf32, #tpu.memory_space<vmem>>, %arg2: memref<32x4xf32, #tpu.memory_space<vmem>>, %arg3: memref<32x32xf32, #tpu.memory_space<vmem>>, %arg4: memref<96x64xf32, #tpu.memory_space<vmem>>, %arg5: memref<3x96xf32, #tpu.memory_space<vmem>>, %arg6: memref<168x1xf32, #tpu.memory_space<vmem>>, %arg7: memref<3x128xf32, #tpu.memory_space<vmem>>) attributes {dimension_semantics = [#tpu.dimension_semantics<parallel>], iteration_bounds = array<i64: 4>, scalar_prefetch = 0 : i64, scratch_operands = 0 : i64, tpu.core_type = #tpu.core_type<tc>, window_params = [{transform_indices = @transform_0, window_bounds = array<i64: 4, 128>}, {pipeline_mode = #tpu.pipeline_mode<synchronous>, transform_indices = @transform_1, window_bounds = array<i64: 32, 4>}, {pipeline_mode = #tpu.pipeline_mode<synchronous>, transform_indices = @transform_2, window_bounds = array<i64: 32, 32>}, {pipeline_mode = #tpu.pipeline_mode<synchronous>, transform_indices = @transform_3, window_bounds = array<i64: 96, 64>}, {pipeline_mode = #tpu.pipeline_mode<synchronous>, transform_indices = @transform_4, window_bounds = array<i64: 3, 96>}, {pipeline_mode = #tpu.pipeline_mode<synchronous>, transform_indices = @transform_5, window_bounds = array<i64: 168, 1>}, {transform_indices = @transform_6, window_bounds = array<i64: 3, 128>}]} {
    %c0 = arith.constant 0 : index
    %c0_0 = arith.constant 0 : index
    %0 = vector.load %arg1[%c0, %c0_0] : memref<4x128xf32, #tpu.memory_space<vmem>>, vector<4x128xf32>
    %c0_1 = arith.constant 0 : index
    %c0_2 = arith.constant 0 : index
    %1 = vector.load %arg2[%c0_1, %c0_2] : memref<32x4xf32, #tpu.memory_space<vmem>>, vector<32x4xf32>
    %cst = arith.constant dense<0.000000e+00> : vector<32x128xf32>
    %2 = tpu.matmul %1, %0, %cst {dimension_numbers = #tpu.dot_dimension_numbers<[1], [0], [0], [1], [0, 0, 1, 1], [], []>} : vector<32x4xf32>, vector<4x128xf32>, vector<32x128xf32> -> vector<32x128xf32>
    %c0_3 = arith.constant 0 : index
    %c0_4 = arith.constant 0 : index
    %3 = vector.load %arg6[%c0_3, %c0_4] : memref<168x1xf32, #tpu.memory_space<vmem>>, vector<32x1xf32>
    %4 = vector.broadcast %3 : vector<32x1xf32> to vector<32x128xf32>
    %5 = arith.addf %2, %4 : vector<32x128xf32>
    %6 = math.tanh %5 : vector<32x128xf32>
    %c0_5 = arith.constant 0 : index
    %c0_6 = arith.constant 0 : index
    %7 = vector.load %arg3[%c0_5, %c0_6] : memref<32x32xf32, #tpu.memory_space<vmem>>, vector<32x32xf32>
    %cst_7 = arith.constant dense<0.000000e+00> : vector<32x128xf32>
    %8 = tpu.matmul %7, %6, %cst_7 {dimension_numbers = #tpu.dot_dimension_numbers<[1], [0], [0], [1], [0, 0, 1, 1], [], []>} : vector<32x32xf32>, vector<32x128xf32>, vector<32x128xf32> -> vector<32x128xf32>
    %c32 = arith.constant 32 : index
    %c0_8 = arith.constant 0 : index
    %9 = vector.load %arg6[%c32, %c0_8] : memref<168x1xf32, #tpu.memory_space<vmem>>, vector<32x1xf32>
    %10 = vector.broadcast %9 : vector<32x1xf32> to vector<32x128xf32>
    %11 = arith.addf %8, %10 : vector<32x128xf32>
    %cst_9 = arith.constant 2.000000e+01 : f32
    %12 = vector.broadcast %cst_9 : f32 to vector<32x128xf32>
    %13 = arith.minimumf %11, %12 : vector<32x128xf32>
    %14 = math.exp %13 : vector<32x128xf32>
    %cst_10 = arith.constant 2.000000e+00 : f32
    %15 = vector.broadcast %cst_10 : f32 to vector<32x128xf32>
    %16 = arith.addf %14, %15 : vector<32x128xf32>
    %17 = arith.mulf %14, %16 : vector<32x128xf32>
    %cst_11 = arith.constant 2.000000e+00 : f32
    %18 = vector.broadcast %cst_11 : f32 to vector<32x128xf32>
    %19 = arith.addf %17, %18 : vector<32x128xf32>
    %20 = tpu.reciprocal %19 {approx = true} : vector<32x128xf32> -> vector<32x128xf32>
    %21 = arith.mulf %19, %20 : vector<32x128xf32>
    %cst_12 = arith.constant 2.000000e+00 : f32
    %22 = vector.broadcast %cst_12 : f32 to vector<32x128xf32>
    %23 = arith.subf %22, %21 : vector<32x128xf32>
    %24 = arith.mulf %20, %23 : vector<32x128xf32>
    %25 = arith.mulf %11, %17 : vector<32x128xf32>
    %26 = arith.mulf %25, %24 : vector<32x128xf32>
    %27 = arith.mulf %26, %26 : vector<32x128xf32>
    %cst_13 = arith.constant 0.000000e+00 : f32
    %28 = vector.broadcast %cst_13 : f32 to vector<32x128xf32>
    %29 = arith.subf %28, %27 : vector<32x128xf32>
    %30 = math.exp %29 : vector<32x128xf32>
    %31 = tpu.concatenate %27, %30 in 0 : vector<32x128xf32>, vector<32x128xf32> -> vector<64x128xf32>
    %c0_14 = arith.constant 0 : index
    %c0_15 = arith.constant 0 : index
    %32 = vector.load %arg4[%c0_14, %c0_15] : memref<96x64xf32, #tpu.memory_space<vmem>>, vector<96x64xf32>
    %cst_16 = arith.constant dense<0.000000e+00> : vector<96x128xf32>
    %33 = tpu.matmul %32, %31, %cst_16 {dimension_numbers = #tpu.dot_dimension_numbers<[1], [0], [0], [1], [0, 0, 1, 1], [], []>} : vector<96x64xf32>, vector<64x128xf32>, vector<96x128xf32> -> vector<96x128xf32>
    %c64 = arith.constant 64 : index
    %c0_17 = arith.constant 0 : index
    %34 = vector.load %arg6[%c64, %c0_17] : memref<168x1xf32, #tpu.memory_space<vmem>>, vector<96x1xf32>
    %35 = vector.broadcast %34 : vector<96x1xf32> to vector<96x128xf32>
    %36 = arith.addf %33, %35 : vector<96x128xf32>
    %37 = vector.extract_strided_slice %36 {offsets = [0, 0], sizes = [32, 128], strides = [1, 1]} : vector<96x128xf32> to vector<32x128xf32>
    %cst_18 = arith.constant 2.000000e+01 : f32
    %38 = vector.broadcast %cst_18 : f32 to vector<32x128xf32>
    %39 = arith.minimumf %37, %38 : vector<32x128xf32>
    %40 = math.exp %39 : vector<32x128xf32>
    %cst_19 = arith.constant 2.000000e+00 : f32
    %41 = vector.broadcast %cst_19 : f32 to vector<32x128xf32>
    %42 = arith.addf %40, %41 : vector<32x128xf32>
    %43 = arith.mulf %40, %42 : vector<32x128xf32>
    %cst_20 = arith.constant 2.000000e+00 : f32
    %44 = vector.broadcast %cst_20 : f32 to vector<32x128xf32>
    %45 = arith.addf %43, %44 : vector<32x128xf32>
    %46 = tpu.reciprocal %45 {approx = true} : vector<32x128xf32> -> vector<32x128xf32>
    %47 = arith.mulf %45, %46 : vector<32x128xf32>
    %cst_21 = arith.constant 2.000000e+00 : f32
    %48 = vector.broadcast %cst_21 : f32 to vector<32x128xf32>
    %49 = arith.subf %48, %47 : vector<32x128xf32>
    %50 = arith.mulf %46, %49 : vector<32x128xf32>
    %51 = arith.mulf %37, %43 : vector<32x128xf32>
    %52 = arith.mulf %51, %50 : vector<32x128xf32>
    %53 = vector.extract_strided_slice %36 {offsets = [32, 0], sizes = [64, 128], strides = [1, 1]} : vector<96x128xf32> to vector<64x128xf32>
    %54 = arith.mulf %53, %53 : vector<64x128xf32>
    %cst_22 = arith.constant 0.000000e+00 : f32
    %55 = vector.broadcast %cst_22 : f32 to vector<64x128xf32>
    %56 = arith.subf %55, %54 : vector<64x128xf32>
    %57 = math.exp %56 : vector<64x128xf32>
    %58 = tpu.concatenate %52, %57 in 0 : vector<32x128xf32>, vector<64x128xf32> -> vector<96x128xf32>
    %c0_23 = arith.constant 0 : index
    %c0_24 = arith.constant 0 : index
    %59 = vector.load %arg5[%c0_23, %c0_24] : memref<3x96xf32, #tpu.memory_space<vmem>>, vector<3x96xf32>
    %cst_25 = arith.constant dense<0.000000e+00> : vector<3x128xf32>
    %60 = tpu.matmul %59, %58, %cst_25 {dimension_numbers = #tpu.dot_dimension_numbers<[1], [0], [0], [1], [0, 0, 1, 1], [], []>} : vector<3x96xf32>, vector<96x128xf32>, vector<3x128xf32> -> vector<3x128xf32>
    %c160 = arith.constant 160 : index
    %c0_26 = arith.constant 0 : index
    %61 = vector.load %arg6[%c160, %c0_26] : memref<168x1xf32, #tpu.memory_space<vmem>>, vector<3x1xf32>
    %62 = vector.broadcast %61 : vector<3x1xf32> to vector<3x128xf32>
    %63 = arith.addf %60, %62 : vector<3x128xf32>
    %c163 = arith.constant 163 : index
    %c0_27 = arith.constant 0 : index
    %64 = vector.load %arg6[%c163, %c0_27] : memref<168x1xf32, #tpu.memory_space<vmem>>, vector<1x1xf32>
    %65 = tpu.iota {dimensions = array<i32: 0>} : vector<3x128xi32>
    %66 = math.tanh %63 : vector<3x128xf32>
    %67 = arith.mulf %63, %63 : vector<3x128xf32>
    %cst_28 = arith.constant 0.000000e+00 : f32
    %68 = vector.broadcast %cst_28 : f32 to vector<3x128xf32>
    %69 = arith.subf %68, %67 : vector<3x128xf32>
    %70 = math.exp %69 : vector<3x128xf32>
    %71 = vector.broadcast %64 : vector<1x1xf32> to vector<3x128xf32>
    %72 = arith.mulf %71, %70 : vector<3x128xf32>
    %73 = math.exp %72 : vector<3x128xf32>
    %c0_i32 = arith.constant 0 : i32
    %74 = vector.broadcast %c0_i32 : i32 to vector<3x128xi32>
    %75 = arith.cmpi eq, %65, %74 : vector<3x128xi32>
    %c1_i32 = arith.constant 1 : i32
    %76 = vector.broadcast %c1_i32 : i32 to vector<3x128xi32>
    %77 = arith.cmpi eq, %65, %76 : vector<3x128xi32>
    %78 = arith.select %77, %73, %63 : vector<3x128xi1>, vector<3x128xf32>
    %79 = arith.select %75, %66, %78 : vector<3x128xi1>, vector<3x128xf32>
    %c0_29 = arith.constant 0 : index
    %c0_30 = arith.constant 0 : index
    %80 = vector.load %arg7[%c0_29, %c0_30] : memref<3x128xf32, #tpu.memory_space<vmem>>, vector<3x128xf32>
    tpu.vector_store %arg7[%c0_29, %c0_30], %79 {strides = array<i32>} : memref<3x128xf32, #tpu.memory_space<vmem>>, vector<3x128xf32>,
    return
  }
  func.func @transform_0(%arg0: i32) -> (i32, i32) {
    %c0_i32 = arith.constant 0 : i32
    %c0_i32_0 = arith.constant 0 : i32
    return %c0_i32, %arg0 : i32, i32
  }
  func.func @transform_1(%arg0: i32) -> (i32, i32) {
    %c0_i32 = arith.constant 0 : i32
    %c0_i32_0 = arith.constant 0 : i32
    %c0_i32_1 = arith.constant 0 : i32
    return %c0_i32, %c0_i32_0 : i32, i32
  }
  func.func @transform_2(%arg0: i32) -> (i32, i32) {
    %c0_i32 = arith.constant 0 : i32
    %c0_i32_0 = arith.constant 0 : i32
    %c0_i32_1 = arith.constant 0 : i32
    return %c0_i32, %c0_i32_0 : i32, i32
  }
  func.func @transform_3(%arg0: i32) -> (i32, i32) {
    %c0_i32 = arith.constant 0 : i32
    %c0_i32_0 = arith.constant 0 : i32
    %c0_i32_1 = arith.constant 0 : i32
    return %c0_i32, %c0_i32_0 : i32, i32
  }
  func.func @transform_4(%arg0: i32) -> (i32, i32) {
    %c0_i32 = arith.constant 0 : i32
    %c0_i32_0 = arith.constant 0 : i32
    %c0_i32_1 = arith.constant 0 : i32
    return %c0_i32, %c0_i32_0 : i32, i32
  }
  func.func @transform_5(%arg0: i32) -> (i32, i32) {
    %c0_i32 = arith.constant 0 : i32
    %c0_i32_0 = arith.constant 0 : i32
    %c0_i32_1 = arith.constant 0 : i32
    return %c0_i32, %c0_i32_0 : i32, i32
  }
  func.func @transform_6(%arg0: i32) -> (i32, i32) {
    %c0_i32 = arith.constant 0 : i32
    %c0_i32_0 = arith.constant 0 : i32
    return %c0_i32, %arg0 : i32, i32
  }
}

</mosaic_0001>

<llo_original>
// kernel: tpu_custom_call.1
$region0: #{tpu_custom_call.1}
  #allocation0 [shape = 'u32[]', space=smem, size = 0x4, offset = 0x4, fixed_abs, tag = 'smem constant byte address 0x4 - core index']
  #allocation1 [shape = 'u32[144,128]{1,0:T(1,128)}', space=vmem, size = 0x12000, scoped, tag = 'internal scratch']
  %s0 = inlined_call_operand.vmem [shape: f32[4,512], index: 0, kind: input, shape index: {}]
  %s1 = inlined_call_operand.vmem [shape: f32[32,4], index: 1, kind: input, shape index: {}]
  %s2 = inlined_call_operand.vmem [shape: f32[32,32], index: 2, kind: input, shape index: {}]
  %s3 = inlined_call_operand.vmem [shape: f32[96,64], index: 3, kind: input, shape index: {}]
  %s4 = inlined_call_operand.vmem [shape: f32[3,96], index: 4, kind: input, shape index: {}]
  %s5 = inlined_call_operand.vmem [shape: f32[168,1], index: 5, kind: input, shape index: {}]
  %s6 = inlined_call_operand.hbm [shape: f32[3,512], index: 6, kind: output, shape index: {}]
  %s7 = sld [smem:[#allocation0]]
  $region57: #{tpu_custom_call.1} parent=0
    _
  %s9 = ssub.s32 1, %s7
  %s10 = scalar_select 0, %s9, %s7
  $region1: #{tpu_custom_call.1} parent=0
    #allocation2 [shape = 'u8[4096]{0}', space=vmem, size = 0x1000, scoped, tag = 'output window, operand 0']
    #allocation3 [shape = 's32[2]{0}', space=sflag, size = 0x8, scoped, tag = 'scoped memory for tpu_custom_call.1']
    %11 = vsyncpa [#allocation3], 0
    %s12 = scalar_lea.sflag [#allocation3], 1
    %13 = vsyncpa %s12, 0
    loop: start=0, step=1, limit=6
    $region2: #{tpu_custom_call.1} parent=1 // loop_pre_header
      _
    $region3: #{tpu_custom_call.1} parent=1 // loop_header
      %s15 = sphi 0, %s19
      %p16 = scmp.ge.s32.totalorder %s15, 6
      %s25 = sphi 0, %s27
      %s28 = sphi 0, %s25
      %s29 = sphi 0, %s28
      %s45 = sphi 0, %s29
      %s49 = sphi 0, %s49
      %s51 = sphi 0, %s49
      %s52 = sphi 0, %s51
      %s66 = sphi 0, %s52
      %s70 = sphi 0, %s70
      %s72 = sphi 0, %s70
      %s73 = sphi 0, %s72
      %s87 = sphi 0, %s73
      %s91 = sphi 0, %s91
      %s93 = sphi 0, %s91
      %s94 = sphi 0, %s93
      %s108 = sphi 0, %s94
      %s112 = sphi 0, %s112
      %s114 = sphi 0, %s112
      %s115 = sphi 0, %s114
      %s129 = sphi 0, %s115
      %s133 = sphi 0, %s133
      %s135 = sphi 0, %s133
      %s136 = sphi 0, %s135
      %s150 = sphi 0, %s136
      %s156 = sphi 0, %s158
      %s159 = sphi 0, %s156
      %s160 = sphi 0, %s159
      %s176 = sphi 0, %s160
    $region4: #{tpu_custom_call.1} parent=1 // loop_header_branch
      %18 = sbr.rel (%p16) target = $region8
    $region5: #{tpu_custom_call.1} parent=1 // loop_body
      %s20 = ssub.s32 %s15, 1
      %s21 = ssub.s32 %s15, 2
      %s22 = sadd.s32 %s15, 1
      %s23 = ssub.s32 %s15, %s22
      %p24 = scmp.eq.s32.totalorder %s23, 0
      %s26 = sadd.s32 %s25, 1
      %s27 = scalar_select %p24, %s25, %s26
      %p30 = pneg %p24
      %p31 = scmp.eq.s32.totalorder %s15, 3
      %p32 = por %p30, %p31
      %p33 = scmp.ne.s32.totalorder %s25, %s28
      %p34 = scmp.eq.s32.totalorder %s15, 0
      %p35 = por %p33, %p34
      %p36 = scmp.ne.s32.totalorder %s25, %s28
      %p37 = scmp.eq.s32.totalorder %s20, 3
      %p38 = por %p36, %p37
      %p39 = scmp.ne.s32.totalorder %s28, %s29
      %p40 = scmp.eq.s32.totalorder %s20, 0
      %p41 = por %p39, %p40
      %p42 = scmp.ne.s32.totalorder %s28, %s29
      %p43 = scmp.eq.s32.totalorder %s21, 3
      %p44 = por %p42, %p43
      %p46 = scmp.ne.s32.totalorder %s29, %s45
      %p47 = scmp.eq.s32.totalorder %s21, 0
      %p48 = por %p46, %p47
      %s50 = sadd.s32 %s49, 1
      %p53 = scmp.eq.s32.totalorder %s15, 3
      %p54 = scmp.ne.s32.totalorder %s49, %s51
      %p55 = scmp.eq.s32.totalorder %s15, 0
      %p56 = por %p54, %p55
      %p57 = scmp.ne.s32.totalorder %s49, %s51
      %p58 = scmp.eq.s32.totalorder %s20, 3
      %p59 = por %p57, %p58
      %p60 = scmp.ne.s32.totalorder %s51, %s52
      %p61 = scmp.eq.s32.totalorder %s20, 0
      %p62 = por %p60, %p61
      %p63 = scmp.ne.s32.totalorder %s51, %s52
      %p64 = scmp.eq.s32.totalorder %s21, 3
      %p65 = por %p63, %p64
      %p67 = scmp.ne.s32.totalorder %s52, %s66
      %p68 = scmp.eq.s32.totalorder %s21, 0
      %p69 = por %p67, %p68
      %s71 = sadd.s32 %s70, 1
      %p74 = scmp.eq.s32.totalorder %s15, 3
      %p75 = scmp.ne.s32.totalorder %s70, %s72
      %p76 = scmp.eq.s32.totalorder %s15, 0
      %p77 = por %p75, %p76
      %p78 = scmp.ne.s32.totalorder %s70, %s72
      %p79 = scmp.eq.s32.totalorder %s20, 3
      %p80 = por %p78, %p79
      %p81 = scmp.ne.s32.totalorder %s72, %s73
      %p82 = scmp.eq.s32.totalorder %s20, 0
      %p83 = por %p81, %p82
      %p84 = scmp.ne.s32.totalorder %s72, %s73
      %p85 = scmp.eq.s32.totalorder %s21, 3
      %p86 = por %p84, %p85
      %p88 = scmp.ne.s32.totalorder %s73, %s87
      %p89 = scmp.eq.s32.totalorder %s21, 0
      %p90 = por %p88, %p89
      %s92 = sadd.s32 %s91, 1
      %p95 = scmp.eq.s32.totalorder %s15, 3
      %p96 = scmp.ne.s32.totalorder %s91, %s93
      %p97 = scmp.eq.s32.totalorder %s15, 0
      %p98 = por %p96, %p97
      %p99 = scmp.ne.s32.totalorder %s91, %s93
      %p100 = scmp.eq.s32.totalorder %s20, 3
      %p101 = por %p99, %p100
      %p102 = scmp.ne.s32.totalorder %s93, %s94
      %p103 = scmp.eq.s32.totalorder %s20, 0
      %p104 = por %p102, %p103
      %p105 = scmp.ne.s32.totalorder %s93, %s94
      %p106 = scmp.eq.s32.totalorder %s21, 3
      %p107 = por %p105, %p106
      %p109 = scmp.ne.s32.totalorder %s94, %s108
      %p110 = scmp.eq.s32.totalorder %s21, 0
      %p111 = por %p109, %p110
      %s113 = sadd.s32 %s112, 1
      %p116 = scmp.eq.s32.totalorder %s15, 3
      %p117 = scmp.ne.s32.totalorder %s112, %s114
      %p118 = scmp.eq.s32.totalorder %s15, 0
      %p119 = por %p117, %p118
      %p120 = scmp.ne.s32.totalorder %s112, %s114
      %p121 = scmp.eq.s32.totalorder %s20, 3
      %p122 = por %p120, %p121
      %p123 = scmp.ne.s32.totalorder %s114, %s115
      %p124 = scmp.eq.s32.totalorder %s20, 0
      %p125 = por %p123, %p124
      %p126 = scmp.ne.s32.totalorder %s114, %s115
      %p127 = scmp.eq.s32.totalorder %s21, 3
      %p128 = por %p126, %p127
      %p130 = scmp.ne.s32.totalorder %s115, %s129
      %p131 = scmp.eq.s32.totalorder %s21, 0
      %p132 = por %p130, %p131
      %s134 = sadd.s32 %s133, 1
      %p137 = scmp.eq.s32.totalorder %s15, 3
      %p138 = scmp.ne.s32.totalorder %s133, %s135
      %p139 = scmp.eq.s32.totalorder %s15, 0
      %p140 = por %p138, %p139
      %p141 = scmp.ne.s32.totalorder %s133, %s135
      %p142 = scmp.eq.s32.totalorder %s20, 3
      %p143 = por %p141, %p142
      %p144 = scmp.ne.s32.totalorder %s135, %s136
      %p145 = scmp.eq.s32.totalorder %s20, 0
      %p146 = por %p144, %p145
      %p147 = scmp.ne.s32.totalorder %s135, %s136
      %p148 = scmp.eq.s32.totalorder %s21, 3
      %p149 = por %p147, %p148
      %p151 = scmp.ne.s32.totalorder %s136, %s150
      %p152 = scmp.eq.s32.totalorder %s21, 0
      %p153 = por %p151, %p152
      %s154 = ssub.s32 %s15, %s22
      %p155 = scmp.eq.s32.totalorder %s154, 0
      %s157 = sadd.s32 %s156, 1
      %s158 = scalar_select %p155, %s156, %s157
      %p161 = pneg %p155
      %p162 = scmp.eq.s32.totalorder %s15, 3
      %p163 = por %p161, %p162
      %p164 = scmp.ne.s32.totalorder %s156, %s159
      %p165 = scmp.eq.s32.totalorder %s15, 0
      %p166 = por %p164, %p165
      %p167 = scmp.ne.s32.totalorder %s156, %s159
      %p168 = scmp.eq.s32.totalorder %s20, 3
      %p169 = por %p167, %p168
      %p170 = scmp.ne.s32.totalorder %s159, %s160
      %p171 = scmp.eq.s32.totalorder %s20, 0
      %p172 = por %p170, %p171
      %p173 = scmp.ne.s32.totalorder %s159, %s160
      %p174 = scmp.eq.s32.totalorder %s21, 3
      %p175 = por %p173, %p174
      %p177 = scmp.ne.s32.totalorder %s160, %s176
      %p178 = scmp.eq.s32.totalorder %s21, 0
      %p179 = por %p177, %p178
      %p180 = scmp.le.s32.totalorder 1, %s15
      %p181 = scmp.lt.s32.totalorder %s15, 5
      %p182 = pnand %p180, %p181
      %p183 = pneg %p182
      // Predicated region
      $region9: #{tpu_custom_call.1} parent=5 // pred_check
        _
      $region10: #{tpu_custom_call.1} parent=5 // pred_check_branch
        %185 = sbr.rel (%p182) target = $region12
      $region11: #{tpu_custom_call.1} parent=5 // pred_region
        %s186 = ssub.s32 %s15, 1
        // Predicated region
        $region13: #{tpu_custom_call.1} parent=11 // pred_check
          %p187 = pneg %p62
        $region14: #{tpu_custom_call.1} parent=11 // pred_check_branch
          %189 = sbr.rel (%p187) target = $region16
        $region15: #{tpu_custom_call.1} parent=11 // pred_region
          _
        $region16: #{tpu_custom_call.1} parent=11 // pred_fallthru
          _
        // Predicated region
        $region17: #{tpu_custom_call.1} parent=11 // pred_check
          %p190 = pneg %p83
        $region18: #{tpu_custom_call.1} parent=11 // pred_check_branch
          %192 = sbr.rel (%p190) target = $region20
        $region19: #{tpu_custom_call.1} parent=11 // pred_region
          _
        $region20: #{tpu_custom_call.1} parent=11 // pred_fallthru
          _
        // Predicated region
        $region21: #{tpu_custom_call.1} parent=11 // pred_check
          %p193 = pneg %p104
        $region22: #{tpu_custom_call.1} parent=11 // pred_check_branch
          %195 = sbr.rel (%p193) target = $region24
        $region23: #{tpu_custom_call.1} parent=11 // pred_region
          _
        $region24: #{tpu_custom_call.1} parent=11 // pred_fallthru
          _
        // Predicated region
        $region25: #{tpu_custom_call.1} parent=11 // pred_check
          %p196 = pneg %p125
        $region26: #{tpu_custom_call.1} parent=11 // pred_check_branch
          %198 = sbr.rel (%p196) target = $region28
        $region27: #{tpu_custom_call.1} parent=11 // pred_region
          _
        $region28: #{tpu_custom_call.1} parent=11 // pred_fallthru
          _
        // Predicated region
        $region29: #{tpu_custom_call.1} parent=11 // pred_check
          %p199 = pneg %p146
        $region30: #{tpu_custom_call.1} parent=11 // pred_check_branch
          %201 = sbr.rel (%p199) target = $region32
        $region31: #{tpu_custom_call.1} parent=11 // pred_region
          _
        $region32: #{tpu_custom_call.1} parent=11 // pred_fallthru
          _
      $region12: #{tpu_custom_call.1} parent=5 // pred_fallthru
        _
      %p202 = scmp.lt.s32.totalorder %s15, 4
      // Predicated region
      $region33: #{tpu_custom_call.1} parent=5 // pred_check
        %p203 = pneg %p202
      $region34: #{tpu_custom_call.1} parent=5 // pred_check_branch
        %205 = sbr.rel (%p203) target = $region36
      $region35: #{tpu_custom_call.1} parent=5 // pred_region
        // Predicated region
        $region37: #{tpu_custom_call.1} parent=35 // pred_check
          %p206 = pneg %p35
        $region38: #{tpu_custom_call.1} parent=35 // pred_check_branch
          %208 = sbr.rel (%p206) target = $region40
        $region39: #{tpu_custom_call.1} parent=35 // pred_region
          %p209 = scmp.lt.s32.totalorder %s15, 3
          %s210 = scalar_select %p209, %s15, 3
          %s211 = smul.addr %s210, 4
          %s212 = scalar_lea.vmem %s0, %s211
        $region40: #{tpu_custom_call.1} parent=35 // pred_fallthru
          _
      $region36: #{tpu_custom_call.1} parent=5 // pred_fallthru
        _
      %p213 = scmp.le.s32.totalorder 1, %s15
      %p214 = scmp.lt.s32.totalorder %s15, 5
      %p215 = pnand %p213, %p214
      %p216 = pneg %p215
      // Predicated region
      $region41: #{tpu_custom_call.1} parent=5 // pred_check
        _
      $region42: #{tpu_custom_call.1} parent=5 // pred_check_branch
        %218 = sbr.rel (%p215) target = $region44
      $region43: #{tpu_custom_call.1} parent=5 // pred_region
        %s219 = ssub.s32 %s15, 1
        %p220 = scmp.lt.s32.totalorder %s20, 3
        %s221 = scalar_select %p220, %s20, 3
        %s222 = smul.addr %s221, 4
        %s223 = scalar_lea.vmem %s0, %s222
        %p224 = pneg %p41
        %p225 = pneg %p38
        %p226 = pneg %p62
        %p227 = pneg %p59
        %p228 = pneg %p83
        %p229 = pneg %p80
        %p230 = pneg %p104
        %p231 = pneg %p101
        %p232 = pneg %p125
        %p233 = pneg %p122
        %p234 = pneg %p146
        %p235 = pneg %p143
        %p236 = pneg %p172
        %p237 = pneg %p169
        %s238 = sand.u32 %s159, 1
        %s239 = scalar_lea.sflag [#allocation3], %s238
        %s240 = sand.u32 %s159, 1
        %s241 = smul.addr %s240, 4
        %s242 = scalar_lea.vmem [#allocation2], %s241
        %p243 = scmp.lt.s32.totalorder %s20, 3
        %s244 = scalar_select %p243, %s20, 3
        %s245 = smul.addr %s244, 4
        %s246 = scalar_lea.vmem %s0, %s245
        %v247 = vld [vmem:[%s246] sm:$0xf]
        %v248 = vld [vmem:[%s1] sm:$0xff]
        %v249 = vld [vmem:[%s1 + $0x8] sm:$0xff]
        %v250 = vld [vmem:[%s1 + $0x10] sm:$0xff]
        %v251 = vld [vmem:[%s1 + $0x18] sm:$0xff]
        %v252 = vld [vmem:[%s5] sm:$0xff]
        %v253 = vld [vmem:[%s5 + $0x8] sm:$0xff]
        %v254 = vld [vmem:[%s5 + $0x10] sm:$0xff]
        %v255 = vld [vmem:[%s5 + $0x18] sm:$0xff]
        %257 = vset.pattern.permute.xlu0 0
        %258 = vperm.xlu0 %257, %v252
        %v259 = vpop.permute.xlu0 %258
        %262 = vset.pattern.permute.xlu0 0
        %263 = vperm.xlu0 %262, %v253
        %v264 = vpop.permute.xlu0 %263
        %267 = vset.pattern.permute.xlu0 0
        %268 = vperm.xlu0 %267, %v254
        %v269 = vpop.permute.xlu0 %268
        %272 = vset.pattern.permute.xlu0 0
        %273 = vperm.xlu0 %272, %v255
        %v274 = vpop.permute.xlu0 %273
        %vm276 = vcmask 31744
        %v278 = vsel %vm276, %v248, 0
        %v281 = vsel %vm276, %v249, 0
        %v284 = vsel %vm276, %v250, 0
        %v287 = vsel %vm276, %v251, 0
        %vm289 = vcmask 1043456
        %v291 = vsel %vm289, %v247, 0
        %293 = vmatprep.subr.mxu0 0.0
        %294 = vmatpush1.msra.mxu0 0.0
        %295 = vmatprep.subr.mxu0 0.0
        %296 = vmatpush1.msra.mxu0 0.0
        %297 = vmatprep.subr.mxu0 0.0
        %298 = vmatpush1.msra.mxu0 0.0
        %299 = vmatprep.subr.mxu0 0.0
        %300 = vmatpush1.msra.mxu0 0.0
        %301 = vmatprep.subr.mxu0 0.0
        %302 = vmatpush1.msra.mxu0 0.0
        %303 = vmatprep.subr.mxu0 0.0
        %304 = vmatpush1.msra.mxu0 0.0
        %305 = vmatprep.subr.mxu0 0.0
        %306 = vmatpush1.msra.mxu0 0.0
        %307 = vmatprep.subr.mxu0 0.0
        %308 = vmatpush1.msra.mxu0 0.0
        %309 = vmatprep.subr.mxu0 0.0
        %310 = vmatpush1.msra.mxu0 0.0
        %311 = vmatprep.subr.mxu0 0.0
        %312 = vmatpush1.msra.mxu0 0.0
        %313 = vmatprep.subr.mxu0 0.0
        %314 = vmatpush1.msra.mxu0 0.0
        %315 = vmatprep.subr.mxu0 0.0
        %316 = vmatpush1.msra.mxu0 0.0
        %317 = vmatprep.subr.mxu0 0.0
        %318 = vmatpush1.msra.mxu0 0.0
        %319 = vmatprep.subr.mxu0 0.0
        %320 = vmatpush1.msra.mxu0 0.0
        %321 = vmatprep.subr.mxu0 0.0
        %322 = vmatpush1.msra.mxu0 0.0
        %323 = vmatprep.subr.mxu0 0.0
        %324 = vmatpush1.msra.mxu0 %v291
        %325 = vmatprep.subr.mxu0 0.0
        %326 = vmatpush2.msra.mxu0 0.0
        %327 = vmatprep.subr.mxu0 0.0
        %328 = vmatpush2.msra.mxu0 0.0
        %329 = vmatprep.subr.mxu0 0.0
        %330 = vmatpush2.msra.mxu0 0.0
        %331 = vmatprep.subr.mxu0 0.0
        %332 = vmatpush2.msra.mxu0 0.0
        %333 = vmatprep.subr.mxu0 0.0
        %334 = vmatpush2.msra.mxu0 0.0
        %335 = vmatprep.subr.mxu0 0.0
        %336 = vmatpush2.msra.mxu0 0.0
        %337 = vmatprep.subr.mxu0 0.0
        %338 = vmatpush2.msra.mxu0 0.0
        %339 = vmatprep.subr.mxu0 0.0
        %340 = vmatpush2.msra.mxu0 0.0
        %341 = vmatprep.subr.mxu0 0.0
        %342 = vmatpush2.msra.mxu0 0.0
        %343 = vmatprep.subr.mxu0 0.0
        %344 = vmatpush2.msra.mxu0 0.0
        %345 = vmatprep.subr.mxu0 0.0
        %346 = vmatpush2.msra.mxu0 0.0
        %347 = vmatprep.subr.mxu0 0.0
        %348 = vmatpush2.msra.mxu0 0.0
        %349 = vmatprep.subr.mxu0 0.0
        %350 = vmatpush2.msra.mxu0 0.0
        %351 = vmatprep.subr.mxu0 0.0
        %352 = vmatpush2.msra.mxu0 0.0
        %353 = vmatprep.subr.mxu0 0.0
        %354 = vmatpush2.msra.mxu0 0.0
        %355 = vmatprep.subr.mxu0 0.0
        %356 = vmatpush2.msra.mxu0 0.0
        %357 = vmatprep.mubr.f32.mxu0 0.0
        %358 = vmatmul.mubr.f32.gmra.mxu0 %v278
        %v359 = vpop.f32.mrf.mxu0
        %v360 = vadd.f32 %v259, %v359
        %v361 = vpop.f32.mrf.mxu0
        %362 = vmatprep.mubr.f32.mxu0 0.0
        %363 = vmatmul.mubr.f32.gmra.mxu0 %v281
        %v364 = vpop.f32.mrf.mxu0
        %v365 = vadd.f32 %v264, %v364
        %v366 = vpop.f32.mrf.mxu0
        %367 = vmatprep.mubr.f32.mxu0 0.0
        %368 = vmatmul.mubr.f32.gmra.mxu0 %v284
        %v369 = vpop.f32.mrf.mxu0
        %v370 = vadd.f32 %v269, %v369
        %v371 = vpop.f32.mrf.mxu0
        %372 = vmatprep.mubr.f32.mxu0 0.0
        %373 = vmatmul.mubr.f32.gmra.mxu0 %v287
        %v374 = vpop.f32.mrf.mxu0
        %v375 = vadd.f32 %v274, %v374
        %v376 = vpop.f32.mrf.mxu0
        %377 = vdwg.mxu0
        %v378 = vtanh.pop %v360
        %v379 = vtanh.pop %v365
        %v380 = vtanh.pop %v370
        %v381 = vtanh.pop %v375
        %v382 = vld [vmem:[%s2] sm:$0xff]
        %v383 = vld [vmem:[%s2 + $0x8] sm:$0xff]
        %v384 = vld [vmem:[%s2 + $0x10] sm:$0xff]
        %v385 = vld [vmem:[%s2 + $0x18] sm:$0xff]
        %v386 = vld [vmem:[%s5 + $0x20] sm:$0xff]
        %v387 = vld [vmem:[%s5 + $0x28] sm:$0xff]
        %v388 = vld [vmem:[%s5 + $0x30] sm:$0xff]
        %v389 = vld [vmem:[%s5 + $0x38] sm:$0xff]
        %391 = vset.pattern.permute.xlu0 0
        %392 = vperm.xlu0 %391, %v386
        %v393 = vpop.permute.xlu0 %392
        %396 = vset.pattern.permute.xlu0 0
        %397 = vperm.xlu0 %396, %v387
        %v398 = vpop.permute.xlu0 %397
        %401 = vset.pattern.permute.xlu0 0
        %402 = vperm.xlu0 %401, %v388
        %v403 = vpop.permute.xlu0 %402
        %406 = vset.pattern.permute.xlu0 0
        %407 = vperm.xlu0 %406, %v389
        %v408 = vpop.permute.xlu0 %407
        %vm410 = vcmask 261120
        %v412 = vsel %vm410, %v382, 0
        %v415 = vsel %vm410, %v383, 0
        %v418 = vsel %vm410, %v384, 0
        %v421 = vsel %vm410, %v385, 0
        %423 = vmatprep.subr.mxu0 0.0
        %424 = vmatpush1.msra.mxu0 0.0
        %425 = vmatprep.subr.mxu0 0.0
        %426 = vmatpush1.msra.mxu0 0.0
        %427 = vmatprep.subr.mxu0 0.0
        %428 = vmatpush1.msra.mxu0 0.0
        %429 = vmatprep.subr.mxu0 0.0
        %430 = vmatpush1.msra.mxu0 0.0
        %431 = vmatprep.subr.mxu0 0.0
        %432 = vmatpush1.msra.mxu0 0.0
        %433 = vmatprep.subr.mxu0 0.0
        %434 = vmatpush1.msra.mxu0 0.0
        %435 = vmatprep.subr.mxu0 0.0
        %436 = vmatpush1.msra.mxu0 0.0
        %437 = vmatprep.subr.mxu0 0.0
        %438 = vmatpush1.msra.mxu0 0.0
        %439 = vmatprep.subr.mxu0 0.0
        %440 = vmatpush1.msra.mxu0 0.0
        %441 = vmatprep.subr.mxu0 0.0
        %442 = vmatpush1.msra.mxu0 0.0
        %443 = vmatprep.subr.mxu0 0.0
        %444 = vmatpush1.msra.mxu0 0.0
        %445 = vmatprep.subr.mxu0 0.0
        %446 = vmatpush1.msra.mxu0 0.0
        %447 = vmatprep.subr.mxu0 0.0
        %448 = vmatpush1.msra.mxu0 %v381
        %449 = vmatprep.subr.mxu0 0.0
        %450 = vmatpush1.msra.mxu0 %v380
        %451 = vmatprep.subr.mxu0 0.0
        %452 = vmatpush1.msra.mxu0 %v379
        %453 = vmatprep.subr.mxu0 0.0
        %454 = vmatpush1.msra.mxu0 %v378
        %455 = vmatprep.subr.mxu0 0.0
        %456 = vmatpush2.msra.mxu0 0.0
        %457 = vmatprep.subr.mxu0 0.0
        %458 = vmatpush2.msra.mxu0 0.0
        %459 = vmatprep.subr.mxu0 0.0
        %460 = vmatpush2.msra.mxu0 0.0
        %461 = vmatprep.subr.mxu0 0.0
        %462 = vmatpush2.msra.mxu0 0.0
        %463 = vmatprep.subr.mxu0 0.0
        %464 = vmatpush2.msra.mxu0 0.0
        %465 = vmatprep.subr.mxu0 0.0
        %466 = vmatpush2.msra.mxu0 0.0
        %467 = vmatprep.subr.mxu0 0.0
        %468 = vmatpush2.msra.mxu0 0.0
        %469 = vmatprep.subr.mxu0 0.0
        %470 = vmatpush2.msra.mxu0 0.0
        %471 = vmatprep.subr.mxu0 0.0
        %472 = vmatpush2.msra.mxu0 0.0
        %473 = vmatprep.subr.mxu0 0.0
        %474 = vmatpush2.msra.mxu0 0.0
        %475 = vmatprep.subr.mxu0 0.0
        %476 = vmatpush2.msra.mxu0 0.0
        %477 = vmatprep.subr.mxu0 0.0
        %478 = vmatpush2.msra.mxu0 0.0
        %479 = vmatprep.subr.mxu0 0.0
        %480 = vmatpush2.msra.mxu0 0.0
        %481 = vmatprep.subr.mxu0 0.0
        %482 = vmatpush2.msra.mxu0 0.0
        %483 = vmatprep.subr.mxu0 0.0
        %484 = vmatpush2.msra.mxu0 0.0
        %485 = vmatprep.subr.mxu0 0.0
        %486 = vmatpush2.msra.mxu0 0.0
        %487 = vmatprep.mubr.f32.mxu0 0.0
        %488 = vmatmul.mubr.f32.gmra.mxu0 %v412
        %v489 = vpop.f32.mrf.mxu0
        %v490 = vadd.f32 %v393, %v489
        %v491 = vpop.f32.mrf.mxu0
        %492 = vmatprep.mubr.f32.mxu0 0.0
        %493 = vmatmul.mubr.f32.gmra.mxu0 %v415
        %v494 = vpop.f32.mrf.mxu0
        %v495 = vadd.f32 %v398, %v494
        %v496 = vpop.f32.mrf.mxu0
        %497 = vmatprep.mubr.f32.mxu0 0.0
        %498 = vmatmul.mubr.f32.gmra.mxu0 %v418
        %v499 = vpop.f32.mrf.mxu0
        %v500 = vadd.f32 %v403, %v499
        %v501 = vpop.f32.mrf.mxu0
        %502 = vmatprep.mubr.f32.mxu0 0.0
        %503 = vmatmul.mubr.f32.gmra.mxu0 %v421
        %v504 = vpop.f32.mrf.mxu0
        %v505 = vadd.f32 %v408, %v504
        %v506 = vpop.f32.mrf.mxu0
        %507 = vdwg.mxu0
        %v508 = vmin.f32 %v490, 20.0
        %v509 = vmin.f32 %v495, 20.0
        %v510 = vmin.f32 %v500, 20.0
        %v511 = vmin.f32 %v505, 20.0
        %v512 = vmul.f32 %v508, 1.442695
        %v513 = vpow.pop %v512
        %v514 = vmul.f32 %v509, 1.442695
        %v515 = vpow.pop %v514
        %v516 = vmul.f32 %v510, 1.442695
        %v517 = vpow.pop %v516
        %v518 = vmul.f32 %v511, 1.442695
        %v519 = vpow.pop %v518
        %v520 = vadd.f32 %v513, 2.0
        %v521 = vadd.f32 %v515, 2.0
        %v522 = vadd.f32 %v517, 2.0
        %v523 = vadd.f32 %v519, 2.0
        %v524 = vmul.f32 %v513, %v520
        %v525 = vmul.f32 %v515, %v521
        %v526 = vmul.f32 %v517, %v522
        %v527 = vmul.f32 %v519, %v523
        %v528 = vadd.f32 %v524, 2.0
        %v529 = vadd.f32 %v525, 2.0
        %v530 = vadd.f32 %v526, 2.0
        %v531 = vadd.f32 %v527, 2.0
        %v532 = vrcp.pop %v528
        %v533 = vrcp.pop %v529
        %v534 = vrcp.pop %v530
        %v535 = vrcp.pop %v531
        %v536 = vmul.f32 %v528, %v532
        %v537 = vmul.f32 %v529, %v533
        %v538 = vmul.f32 %v530, %v534
        %v539 = vmul.f32 %v531, %v535
        %v540 = vsub.f32 2.0, %v536
        %v541 = vsub.f32 2.0, %v537
        %v542 = vsub.f32 2.0, %v538
        %v543 = vsub.f32 2.0, %v539
        %v544 = vmul.f32 %v532, %v540
        %v545 = vmul.f32 %v533, %v541
        %v546 = vmul.f32 %v534, %v542
        %v547 = vmul.f32 %v535, %v543
        %v548 = vmul.f32 %v490, %v524
        %v549 = vmul.f32 %v495, %v525
        %v550 = vmul.f32 %v500, %v526
        %v551 = vmul.f32 %v505, %v527
        %v552 = vmul.f32 %v548, %v544
        %v553 = vmul.f32 %v549, %v545
        %v554 = vmul.f32 %v550, %v546
        %v555 = vmul.f32 %v551, %v547
        %v556 = vmul.f32 %v552, %v552
        %v557 = vmul.f32 %v553, %v553
        %v558 = vmul.f32 %v554, %v554
        %v559 = vmul.f32 %v555, %v555
        %v560 = vsub.f32 0.0, %v556
        %v561 = vsub.f32 0.0, %v557
        %v562 = vsub.f32 0.0, %v558
        %v563 = vsub.f32 0.0, %v559
        %v564 = vmul.f32 %v560, 1.442695
        %v565 = vpow.pop %v564
        %v566 = vmul.f32 %v561, 1.442695
        %v567 = vpow.pop %v566
        %v568 = vmul.f32 %v562, 1.442695
        %v569 = vpow.pop %v568
        %v570 = vmul.f32 %v563, 1.442695
        %v571 = vpow.pop %v570
        %v572 = vld [vmem:[%s3] sm:$0xff]
        %v573 = vld [vmem:[%s3 + $0x8] sm:$0xff]
        %v574 = vld [vmem:[%s3 + $0x10] sm:$0xff]
        %v575 = vld [vmem:[%s3 + $0x18] sm:$0xff]
        %v576 = vld [vmem:[%s3 + $0x20] sm:$0xff]
        %v577 = vld [vmem:[%s3 + $0x28] sm:$0xff]
        %v578 = vld [vmem:[%s3 + $0x30] sm:$0xff]
        %v579 = vld [vmem:[%s3 + $0x38] sm:$0xff]
        %v580 = vld [vmem:[%s3 + $0x40] sm:$0xff]
        %v581 = vld [vmem:[%s3 + $0x48] sm:$0xff]
        %v582 = vld [vmem:[%s3 + $0x50] sm:$0xff]
        %v583 = vld [vmem:[%s3 + $0x58] sm:$0xff]
        %v584 = vld [vmem:[%s5 + $0x40] sm:$0xff]
        %v585 = vld [vmem:[%s5 + $0x48] sm:$0xff]
        %v586 = vld [vmem:[%s5 + $0x50] sm:$0xff]
        %v587 = vld [vmem:[%s5 + $0x58] sm:$0xff]
        %v588 = vld [vmem:[%s5 + $0x60] sm:$0xff]
        %v589 = vld [vmem:[%s5 + $0x68] sm:$0xff]
        %v590 = vld [vmem:[%s5 + $0x70] sm:$0xff]
        %v591 = vld [vmem:[%s5 + $0x78] sm:$0xff]
        %v592 = vld [vmem:[%s5 + $0x80] sm:$0xff]
        %v593 = vld [vmem:[%s5 + $0x88] sm:$0xff]
        %v594 = vld [vmem:[%s5 + $0x90] sm:$0xff]
        %v595 = vld [vmem:[%s5 + $0x98] sm:$0xff]
        %597 = vset.pattern.permute.xlu0 0
        %598 = vperm.xlu0 %597, %v584
        %v599 = vpop.permute.xlu0 %598
        %602 = vset.pattern.permute.xlu0 0
        %603 = vperm.xlu0 %602, %v585
        %v604 = vpop.permute.xlu0 %603
        %607 = vset.pattern.permute.xlu0 0
        %608 = vperm.xlu0 %607, %v586
        %v609 = vpop.permute.xlu0 %608
        %612 = vset.pattern.permute.xlu0 0
        %613 = vperm.xlu0 %612, %v587
        %v614 = vpop.permute.xlu0 %613
        %617 = vset.pattern.permute.xlu0 0
        %618 = vperm.xlu0 %617, %v588
        %v619 = vpop.permute.xlu0 %618
        %622 = vset.pattern.permute.xlu0 0
        %623 = vperm.xlu0 %622, %v589
        %v624 = vpop.permute.xlu0 %623
        %627 = vset.pattern.permute.xlu0 0
        %628 = vperm.xlu0 %627, %v590
        %v629 = vpop.permute.xlu0 %628
        %632 = vset.pattern.permute.xlu0 0
        %633 = vperm.xlu0 %632, %v591
        %v634 = vpop.permute.xlu0 %633
        %637 = vset.pattern.permute.xlu0 0
        %638 = vperm.xlu0 %637, %v592
        %v639 = vpop.permute.xlu0 %638
        %642 = vset.pattern.permute.xlu0 0
        %643 = vperm.xlu0 %642, %v593
        %v644 = vpop.permute.xlu0 %643
        %647 = vset.pattern.permute.xlu0 0
        %648 = vperm.xlu0 %647, %v594
        %v649 = vpop.permute.xlu0 %648
        %652 = vset.pattern.permute.xlu0 0
        %653 = vperm.xlu0 %652, %v595
        %v654 = vpop.permute.xlu0 %653
        %vm656 = vcmask 523264
        %v658 = vsel %vm656, %v572, 0
        %v661 = vsel %vm656, %v573, 0
        %v664 = vsel %vm656, %v574, 0
        %v667 = vsel %vm656, %v575, 0
        %v670 = vsel %vm656, %v576, 0
        %v673 = vsel %vm656, %v577, 0
        %v676 = vsel %vm656, %v578, 0
        %v679 = vsel %vm656, %v579, 0
        %v682 = vsel %vm656, %v580, 0
        %v685 = vsel %vm656, %v581, 0
        %v688 = vsel %vm656, %v582, 0
        %v691 = vsel %vm656, %v583, 0
        %693 = vmatprep.subr.mxu0 0.0
        %694 = vmatpush1.msra.mxu0 0.0
        %695 = vmatprep.subr.mxu0 0.0
        %696 = vmatpush1.msra.mxu0 0.0
        %697 = vmatprep.subr.mxu0 0.0
        %698 = vmatpush1.msra.mxu0 0.0
        %699 = vmatprep.subr.mxu0 0.0
        %700 = vmatpush1.msra.mxu0 0.0
        %701 = vmatprep.subr.mxu0 0.0
        %702 = vmatpush1.msra.mxu0 0.0
        %703 = vmatprep.subr.mxu0 0.0
        %704 = vmatpush1.msra.mxu0 0.0
        %705 = vmatprep.subr.mxu0 0.0
        %706 = vmatpush1.msra.mxu0 0.0
        %707 = vmatprep.subr.mxu0 0.0
        %708 = vmatpush1.msra.mxu0 0.0
        %709 = vmatprep.subr.mxu0 0.0
        %710 = vmatpush1.msra.mxu0 %v571
        %711 = vmatprep.subr.mxu0 0.0
        %712 = vmatpush1.msra.mxu0 %v569
        %713 = vmatprep.subr.mxu0 0.0
        %714 = vmatpush1.msra.mxu0 %v567
        %715 = vmatprep.subr.mxu0 0.0
        %716 = vmatpush1.msra.mxu0 %v565
        %717 = vmatprep.subr.mxu0 0.0
        %718 = vmatpush1.msra.mxu0 %v559
        %719 = vmatprep.subr.mxu0 0.0
        %720 = vmatpush1.msra.mxu0 %v558
        %721 = vmatprep.subr.mxu0 0.0
        %722 = vmatpush1.msra.mxu0 %v557
        %723 = vmatprep.subr.mxu0 0.0
        %724 = vmatpush1.msra.mxu0 %v556
        %725 = vmatprep.subr.mxu0 0.0
        %726 = vmatpush2.msra.mxu0 0.0
        %727 = vmatprep.subr.mxu0 0.0
        %728 = vmatpush2.msra.mxu0 0.0
        %729 = vmatprep.subr.mxu0 0.0
        %730 = vmatpush2.msra.mxu0 0.0
        %731 = vmatprep.subr.mxu0 0.0
        %732 = vmatpush2.msra.mxu0 0.0
        %733 = vmatprep.subr.mxu0 0.0
        %734 = vmatpush2.msra.mxu0 0.0
        %735 = vmatprep.subr.mxu0 0.0
        %736 = vmatpush2.msra.mxu0 0.0
        %737 = vmatprep.subr.mxu0 0.0
        %738 = vmatpush2.msra.mxu0 0.0
        %739 = vmatprep.subr.mxu0 0.0
        %740 = vmatpush2.msra.mxu0 0.0
        %741 = vmatprep.subr.mxu0 0.0
        %742 = vmatpush2.msra.mxu0 0.0
        %743 = vmatprep.subr.mxu0 0.0
        %744 = vmatpush2.msra.mxu0 0.0
        %745 = vmatprep.subr.mxu0 0.0
        %746 = vmatpush2.msra.mxu0 0.0
        %747 = vmatprep.subr.mxu0 0.0
        %748 = vmatpush2.msra.mxu0 0.0
        %749 = vmatprep.subr.mxu0 0.0
        %750 = vmatpush2.msra.mxu0 0.0
        %751 = vmatprep.subr.mxu0 0.0
        %752 = vmatpush2.msra.mxu0 0.0
        %753 = vmatprep.subr.mxu0 0.0
        %754 = vmatpush2.msra.mxu0 0.0
        %755 = vmatprep.subr.mxu0 0.0
        %756 = vmatpush2.msra.mxu0 0.0
        %757 = vmatprep.mubr.f32.mxu0 0.0
        %758 = vmatmul.mubr.f32.gmra.mxu0 %v658
        %v759 = vpop.f32.mrf.mxu0
        %v760 = vadd.f32 %v599, %v759
        %v761 = vpop.f32.mrf.mxu0
        %762 = vmatprep.mubr.f32.mxu0 0.0
        %763 = vmatmul.mubr.f32.gmra.mxu0 %v661
        %v764 = vpop.f32.mrf.mxu0
        %v765 = vadd.f32 %v604, %v764
        %v766 = vpop.f32.mrf.mxu0
        %767 = vmatprep.mubr.f32.mxu0 0.0
        %768 = vmatmul.mubr.f32.gmra.mxu0 %v664
        %v769 = vpop.f32.mrf.mxu0
        %v770 = vadd.f32 %v609, %v769
        %v771 = vpop.f32.mrf.mxu0
        %772 = vmatprep.mubr.f32.mxu0 0.0
        %773 = vmatmul.mubr.f32.gmra.mxu0 %v667
        %v774 = vpop.f32.mrf.mxu0
        %v775 = vadd.f32 %v614, %v774
        %v776 = vpop.f32.mrf.mxu0
        %777 = vmatprep.mubr.f32.mxu0 0.0
        %778 = vmatmul.mubr.f32.gmra.mxu0 %v670
        %v779 = vpop.f32.mrf.mxu0
        %v780 = vadd.f32 %v619, %v779
        %v781 = vpop.f32.mrf.mxu0
        %782 = vmatprep.mubr.f32.mxu0 0.0
        %783 = vmatmul.mubr.f32.gmra.mxu0 %v673
        %v784 = vpop.f32.mrf.mxu0
        %v785 = vadd.f32 %v624, %v784
        %v786 = vpop.f32.mrf.mxu0
        %787 = vmatprep.mubr.f32.mxu0 0.0
        %788 = vmatmul.mubr.f32.gmra.mxu0 %v676
        %v789 = vpop.f32.mrf.mxu0
        %v790 = vadd.f32 %v629, %v789
        %v791 = vpop.f32.mrf.mxu0
        %792 = vmatprep.mubr.f32.mxu0 0.0
        %793 = vmatmul.mubr.f32.gmra.mxu0 %v679
        %v794 = vpop.f32.mrf.mxu0
        %v795 = vadd.f32 %v634, %v794
        %v796 = vpop.f32.mrf.mxu0
        %797 = vmatprep.mubr.f32.mxu0 0.0
        %798 = vmatmul.mubr.f32.gmra.mxu0 %v682
        %v799 = vpop.f32.mrf.mxu0
        %v800 = vadd.f32 %v639, %v799
        %v801 = vpop.f32.mrf.mxu0
        %802 = vmatprep.mubr.f32.mxu0 0.0
        %803 = vmatmul.mubr.f32.gmra.mxu0 %v685
        %v804 = vpop.f32.mrf.mxu0
        %v805 = vadd.f32 %v644, %v804
        %v806 = vpop.f32.mrf.mxu0
        %807 = vmatprep.mubr.f32.mxu0 0.0
        %808 = vmatmul.mubr.f32.gmra.mxu0 %v688
        %v809 = vpop.f32.mrf.mxu0
        %v810 = vadd.f32 %v649, %v809
        %v811 = vpop.f32.mrf.mxu0
        %812 = vmatprep.mubr.f32.mxu0 0.0
        %813 = vmatmul.mubr.f32.gmra.mxu0 %v691
        %v814 = vpop.f32.mrf.mxu0
        %v815 = vadd.f32 %v654, %v814
        %v816 = vpop.f32.mrf.mxu0
        %817 = vdwg.mxu0
        %v818 = vmin.f32 %v760, 20.0
        %v819 = vmin.f32 %v765, 20.0
        %v820 = vmin.f32 %v770, 20.0
        %v821 = vmin.f32 %v775, 20.0
        %v822 = vmul.f32 %v818, 1.442695
        %v823 = vpow.pop %v822
        %v824 = vmul.f32 %v819, 1.442695
        %v825 = vpow.pop %v824
        %v826 = vmul.f32 %v820, 1.442695
        %v827 = vpow.pop %v826
        %v828 = vmul.f32 %v821, 1.442695
        %v829 = vpow.pop %v828
        %v830 = vadd.f32 %v823, 2.0
        %v831 = vadd.f32 %v825, 2.0
        %v832 = vadd.f32 %v827, 2.0
        %v833 = vadd.f32 %v829, 2.0
        %v834 = vmul.f32 %v823, %v830
        %v835 = vmul.f32 %v825, %v831
        %v836 = vmul.f32 %v827, %v832
        %v837 = vmul.f32 %v829, %v833
        %v838 = vadd.f32 %v834, 2.0
        %v839 = vadd.f32 %v835, 2.0
        %v840 = vadd.f32 %v836, 2.0
        %v841 = vadd.f32 %v837, 2.0
        %v842 = vrcp.pop %v838
        %v843 = vrcp.pop %v839
        %v844 = vrcp.pop %v840
        %v845 = vrcp.pop %v841
        %v846 = vmul.f32 %v838, %v842
        %v847 = vmul.f32 %v839, %v843
        %v848 = vmul.f32 %v840, %v844
        %v849 = vmul.f32 %v841, %v845
        %v850 = vsub.f32 2.0, %v846
        %v851 = vsub.f32 2.0, %v847
        %v852 = vsub.f32 2.0, %v848
        %v853 = vsub.f32 2.0, %v849
        %v854 = vmul.f32 %v842, %v850
        %v855 = vmul.f32 %v843, %v851
        %v856 = vmul.f32 %v844, %v852
        %v857 = vmul.f32 %v845, %v853
        %v858 = vmul.f32 %v760, %v834
        %v859 = vmul.f32 %v765, %v835
        %v860 = vmul.f32 %v770, %v836
        %v861 = vmul.f32 %v775, %v837
        %v862 = vmul.f32 %v858, %v854
        %v863 = vmul.f32 %v859, %v855
        %v864 = vmul.f32 %v860, %v856
        %v865 = vmul.f32 %v861, %v857
        %v866 = vmul.f32 %v780, %v780
        %v867 = vmul.f32 %v785, %v785
        %v868 = vmul.f32 %v790, %v790
        %v869 = vmul.f32 %v795, %v795
        %v870 = vmul.f32 %v800, %v800
        %v871 = vmul.f32 %v805, %v805
        %v872 = vmul.f32 %v810, %v810
        %v873 = vmul.f32 %v815, %v815
        %v874 = vsub.f32 0.0, %v866
        %v875 = vsub.f32 0.0, %v867
        %v876 = vsub.f32 0.0, %v868
        %v877 = vsub.f32 0.0, %v869
        %v878 = vsub.f32 0.0, %v870
        %v879 = vsub.f32 0.0, %v871
        %v880 = vsub.f32 0.0, %v872
        %v881 = vsub.f32 0.0, %v873
        %v882 = vmul.f32 %v874, 1.442695
        %v883 = vpow.pop %v882
        %v884 = vmul.f32 %v875, 1.442695
        %v885 = vpow.pop %v884
        %v886 = vmul.f32 %v876, 1.442695
        %v887 = vpow.pop %v886
        %v888 = vmul.f32 %v877, 1.442695
        %v889 = vpow.pop %v888
        %v890 = vmul.f32 %v878, 1.442695
        %v891 = vpow.pop %v890
        %v892 = vmul.f32 %v879, 1.442695
        %v893 = vpow.pop %v892
        %v894 = vmul.f32 %v880, 1.442695
        %v895 = vpow.pop %v894
        %v896 = vmul.f32 %v881, 1.442695
        %v897 = vpow.pop %v896
        %v898 = vld [vmem:[%s4] sm:$0x7]
        %v899 = vld [vmem:[%s5 + $0xa0] sm:$0x7]
        %901 = vset.pattern.permute.xlu0 0
        %902 = vperm.xlu0 %901, %v899
        %v903 = vpop.permute.xlu0 %902
        %vm905 = vcmask 785408
        %v907 = vsel %vm905, %v898, 0
        %909 = vmatprep.subr.mxu0 0.0
        %910 = vmatpush1.msra.mxu0 0.0
        %911 = vmatprep.subr.mxu0 0.0
        %912 = vmatpush1.msra.mxu0 0.0
        %913 = vmatprep.subr.mxu0 0.0
        %914 = vmatpush1.msra.mxu0 0.0
        %915 = vmatprep.subr.mxu0 0.0
        %916 = vmatpush1.msra.mxu0 0.0
        %917 = vmatprep.subr.mxu0 0.0
        %918 = vmatpush1.msra.mxu0 %v897
        %919 = vmatprep.subr.mxu0 0.0
        %920 = vmatpush1.msra.mxu0 %v895
        %921 = vmatprep.subr.mxu0 0.0
        %922 = vmatpush1.msra.mxu0 %v893
        %923 = vmatprep.subr.mxu0 0.0
        %924 = vmatpush1.msra.mxu0 %v891
        %925 = vmatprep.subr.mxu0 0.0
        %926 = vmatpush1.msra.mxu0 %v889
        %927 = vmatprep.subr.mxu0 0.0
        %928 = vmatpush1.msra.mxu0 %v887
        %929 = vmatprep.subr.mxu0 0.0
        %930 = vmatpush1.msra.mxu0 %v885
        %931 = vmatprep.subr.mxu0 0.0
        %932 = vmatpush1.msra.mxu0 %v883
        %933 = vmatprep.subr.mxu0 0.0
        %934 = vmatpush1.msra.mxu0 %v865
        %935 = vmatprep.subr.mxu0 0.0
        %936 = vmatpush1.msra.mxu0 %v864
        %937 = vmatprep.subr.mxu0 0.0
        %938 = vmatpush1.msra.mxu0 %v863
        %939 = vmatprep.subr.mxu0 0.0
        %940 = vmatpush1.msra.mxu0 %v862
        %941 = vmatprep.subr.mxu0 0.0
        %942 = vmatpush2.msra.mxu0 0.0
        %943 = vmatprep.subr.mxu0 0.0
        %944 = vmatpush2.msra.mxu0 0.0
        %945 = vmatprep.subr.mxu0 0.0
        %946 = vmatpush2.msra.mxu0 0.0
        %947 = vmatprep.subr.mxu0 0.0
        %948 = vmatpush2.msra.mxu0 0.0
        %949 = vmatprep.subr.mxu0 0.0
        %950 = vmatpush2.msra.mxu0 0.0
        %951 = vmatprep.subr.mxu0 0.0
        %952 = vmatpush2.msra.mxu0 0.0
        %953 = vmatprep.subr.mxu0 0.0
        %954 = vmatpush2.msra.mxu0 0.0
        %955 = vmatprep.subr.mxu0 0.0
        %956 = vmatpush2.msra.mxu0 0.0
        %957 = vmatprep.subr.mxu0 0.0
        %958 = vmatpush2.msra.mxu0 0.0
        %959 = vmatprep.subr.mxu0 0.0
        %960 = vmatpush2.msra.mxu0 0.0
        %961 = vmatprep.subr.mxu0 0.0
        %962 = vmatpush2.msra.mxu0 0.0
        %963 = vmatprep.subr.mxu0 0.0
        %964 = vmatpush2.msra.mxu0 0.0
        %965 = vmatprep.subr.mxu0 0.0
        %966 = vmatpush2.msra.mxu0 0.0
        %967 = vmatprep.subr.mxu0 0.0
        %968 = vmatpush2.msra.mxu0 0.0
        %969 = vmatprep.subr.mxu0 0.0
        %970 = vmatpush2.msra.mxu0 0.0
        %971 = vmatprep.subr.mxu0 0.0
        %972 = vmatpush2.msra.mxu0 0.0
        %973 = vmatprep.mubr.f32.mxu0 0.0
        %974 = vmatmul.mubr.f32.gmra.mxu0 %v907
        %v975 = vpop.f32.mrf.mxu0
        %v976 = vadd.f32 %v903, %v975
        %v977 = vpop.f32.mrf.mxu0
        %978 = vdwg.mxu0
        %v979 = vld [vmem:[%s5 + $0xa3] sm:$0x1]
        %v980 = vlaneseq
        %v981 = vshrl.u32 %v980, 7
        %v982 = vtanh.pop %v976
        %v983 = vmul.f32 %v976, %v976
        %v984 = vsub.f32 0.0, %v983
        %v985 = vmul.f32 %v984, 1.442695
        %v986 = vpow.pop %v985
        %s988 = vtos %v979
        %v989 = vstv %s988
        %v991 = vmul.f32 %v989, %v986
        %v992 = vmul.f32 %v991, 1.442695
        %v993 = vpow.pop %v992
        %vm994 = vcmp.eq.s32.totalorder %v981, 0
        %vm995 = vcmp.eq.s32.totalorder %v981, 1
        %v996 = vsel %vm995, %v993, %v976
        %v997 = vsel %vm994, %v982, %v996
        %998 = vst [vmem:[%s242] sm:$0x7] %v997
        %s999 = sand.u32 %s159, 1
        %s1000 = scalar_lea.sflag [#allocation3], %s999
        %s1001 = sand.u32 %s159, 1
        %s1002 = smul.addr %s1001, 4
        %s1003 = scalar_lea.vmem [#allocation2], %s1002
        // Predicated region
        $region45: #{tpu_custom_call.1} parent=43 // pred_check
          %p1004 = pneg %p169
        $region46: #{tpu_custom_call.1} parent=43 // pred_check_branch
          %1006 = sbr.rel (%p1004) target = $region48
        $region47: #{tpu_custom_call.1} parent=43 // pred_region
          %s1008 = ssub.s32 64, 64
          %1009 = vsyncadd %s1000, %s1008
          %s1010 = smul.addr %s20, 64
          %s1011 = scalar_lea.hbm %s6, %s1010
          %s1013 = sshll.u32 %s1003, 4
          %s1014 = int_to_ptr.vmem [resolvable:$true] %s1013
          %1016 = dma.vmem_to_hbm [thread:$0]  %s1014, 64, %s1011, %s1000
        $region48: #{tpu_custom_call.1} parent=43 // pred_fallthru
          _
      $region44: #{tpu_custom_call.1} parent=5 // pred_fallthru
        _
      %p1017 = scmp.le.s32.totalorder 2, %s15
      // Predicated region
      $region49: #{tpu_custom_call.1} parent=5 // pred_check
        %p1018 = pneg %p1017
      $region50: #{tpu_custom_call.1} parent=5 // pred_check_branch
        %1020 = sbr.rel (%p1018) target = $region52
      $region51: #{tpu_custom_call.1} parent=5 // pred_region
        %s1021 = ssub.s32 %s15, 2
        // Predicated region
        $region53: #{tpu_custom_call.1} parent=51 // pred_check
          %p1022 = pneg %p175
        $region54: #{tpu_custom_call.1} parent=51 // pred_check_branch
          %1024 = sbr.rel (%p1022) target = $region56
        $region55: #{tpu_custom_call.1} parent=51 // pred_region
          %s1025 = sand.u32 %s160, 1
          %s1026 = scalar_lea.sflag [#allocation3], %s1025
          %s1027 = sand.u32 %s160, 1
          %s1028 = smul.addr %s1027, 4
          %s1029 = scalar_lea.vmem [#allocation2], %s1028
          %1030 = dma.done %s1026, 64
        $region56: #{tpu_custom_call.1} parent=51 // pred_fallthru
          _
      $region52: #{tpu_custom_call.1} parent=5 // pred_fallthru
        _
    $region6: #{tpu_custom_call.1} parent=1 // loop_footer
      %s19 = sadd.s32 1, %s15
    $region7: #{tpu_custom_call.1} parent=1 // loop_footer_branch
      %14 = sbr.rel target = $region3
    $region8: #{tpu_custom_call.1} parent=1 // loop_exit
      _
    %1031 = vsyncpa [#allocation3], 1
    %s1032 = scalar_lea.sflag [#allocation3], 1
    %1033 = vsyncpa %s1032, 1

</llo_original>
